<compile_context>
chip_gen: v5e
topology: v5e:2x2
jax: 0.10.0
libtpu: 0.0.40
codegen_flags: <defaults>
</compile_context>

<pallas_src>
import jax
import jax.numpy as jnp
from jax.experimental import pallas as pl
from jax.experimental.pallas import tpu as pltpu

_LANE = 128
_SUBLANE = 8
_MAX_LANES = 4096              # cap lane width (keeps rows large for big tensors)
_TARGET_TILE_BYTES = 2 << 20   # ~2 MiB/tile; 2 in + 2 out buffers ~ 8 MiB resident


def _copy_kernel(x_ref, o_ref):
    # The base Model applies no transformation; activations pass through
    # unchanged (gradient hooking is an autograd-side effect, not compute).
    o_ref[...] = x_ref[...]


def _pallas_identity_2d(x2d):
    """Identity copy of a lane-dense (rows, lanes) array via Pallas."""
    rows, lanes = x2d.shape
    itemsize = jnp.dtype(x2d.dtype).itemsize
    target_rows = max(_SUBLANE, _TARGET_TILE_BYTES // (lanes * itemsize))

    if rows <= target_rows:
        # Whole tensor in one block: full-extent block shapes are exempt from
        # the (8, 128) divisibility requirement.
        tile_r = rows
        grid = (1,)
    else:
        # Big tile, multiple of 8 sublanes; cdiv grid + masked partial last
        # block keep trailing rows correct without any wrapper-side padding.
        tile_r = (target_rows // _SUBLANE) * _SUBLANE
        grid = (pl.cdiv(rows, tile_r),)

    return pl.pallas_call(
        _copy_kernel,
        out_shape=jax.ShapeDtypeStruct((rows, lanes), x2d.dtype),
        grid=grid,
        in_specs=[pl.BlockSpec((tile_r, lanes), lambda i: (i, 0))],
        out_specs=pl.BlockSpec((tile_r, lanes), lambda i: (i, 0)),
        compiler_params=pltpu.CompilerParams(
            dimension_semantics=("parallel",),
        ),
    )(x2d)


def _choose_lanes(n):
    """Largest multiple of 128 (<= cap) that divides n, or 0 if none."""
    cap = min(_MAX_LANES, (n // _LANE) * _LANE)
    for cand in range(cap, _LANE - 1, -_LANE):
        if n % cand == 0:
            return cand
    return 0


class PallasModel:
    """JAX/Pallas analogue of the abstract PyTorch `Model` base class."""

    def __init__(self):
        self.gradient = None  # populated by activations_hook

    def activations_hook(self, grad):
        self.gradient = grad

    def get_gradient(self):
        return self.gradient

    def get_activations(self, x):
        # In the reference this calls self.features(x) (abstract / identity
        # routing).  We push the activations through the Pallas copy kernel
        # so the HBM->VMEM->HBM data path is exercised on TPU.
        shape = x.shape
        flat = x.reshape(-1)
        n = flat.shape[0]

        lanes = _choose_lanes(n)
        if lanes:
            # Exact factorization: zero-copy reshape, no padding traffic.
            x2d = flat.reshape(n // lanes, lanes)
            y2d = _pallas_identity_2d(x2d)
            return y2d.reshape(shape)

        # Fallback (element count not a multiple of 128): a single jnp.pad.
        pad = -(-n // _LANE) * _LANE - n
        x2d = jnp.pad(flat, (0, pad)).reshape(-1, _LANE)
        y2d = _pallas_identity_2d(x2d)
        return y2d.reshape(-1)[:n].reshape(shape)

    def switch_grads(self, enable=True):
        # TODO(synk): no parameters exist on the abstract base; nothing to toggle.
        pass

    def features(self, x):
        raise NotImplementedError  # abstract in the reference module

    def first_activations(self, x):
        raise NotImplementedError  # abstract in the reference module

    def forward(self, x, latent=False):
        raise NotImplementedError  # abstract in the reference module


if __name__ == "__main__":
    key = jax.random.PRNGKey(0)
    # NCHW input, small shapes: batch=2, channels=4, spatial=16x16
    x = jax.random.normal(key, (2, 4, 16, 16), dtype=jnp.float32)

    model = PallasModel()
    y = model.get_activations(x)
    y = jax.block_until_ready(y)

    assert y.shape == x.shape
    assert bool(jnp.allclose(y, x)), "identity pass mismatch"
    print("KERNEL_OK")
</pallas_src>

<mosaic_0001>
module attributes {stable_mosaic.version = 11 : i64} {
  func.func @_copy_kernel(%arg0: i32, %arg1: memref<1x2048xf32, #tpu.memory_space<vmem>>, %arg2: memref<1x2048xf32, #tpu.memory_space<vmem>>) attributes {dimension_semantics = [#tpu.dimension_semantics<parallel>], iteration_bounds = array<i64: 1>, scalar_prefetch = 0 : i64, scratch_operands = 0 : i64, tpu.core_type = #tpu.core_type<tc>, window_params = [{transform_indices = @transform_0, window_bounds = array<i64: 1, 2048>}, {transform_indices = @transform_1, window_bounds = array<i64: 1, 2048>}]} {
    %c0 = arith.constant 0 : index
    %c0_0 = arith.constant 0 : index
    %0 = vector.load %arg1[%c0, %c0_0] : memref<1x2048xf32, #tpu.memory_space<vmem>>, vector<1x2048xf32>
    %c0_1 = arith.constant 0 : index
    %c0_2 = arith.constant 0 : index
    %1 = vector.load %arg2[%c0_1, %c0_2] : memref<1x2048xf32, #tpu.memory_space<vmem>>, vector<1x2048xf32>
    tpu.vector_store %arg2[%c0_1, %c0_2], %0 {strides = array<i32>} : memref<1x2048xf32, #tpu.memory_space<vmem>>, vector<1x2048xf32>,
    return
  }
  func.func @transform_0(%arg0: i32) -> (i32, i32) {
    %c0_i32 = arith.constant 0 : i32
    %c0_i32_0 = arith.constant 0 : i32
    return %arg0, %c0_i32 : i32, i32
  }
  func.func @transform_1(%arg0: i32) -> (i32, i32) {
    %c0_i32 = arith.constant 0 : i32
    %c0_i32_0 = arith.constant 0 : i32
    return %arg0, %c0_i32 : i32, i32
  }
}

</mosaic_0001>

<llo_original>
// kernel: tpu_custom_call.1
$region0: #{tpu_custom_call.1}
  #allocation0 [shape = 'u32[]', space=smem, size = 0x4, offset = 0x4, fixed_abs, tag = 'smem constant byte address 0x4 - core index']
  #allocation1 [shape = 'u32[72,128]{1,0:T(1,128)}', space=vmem, size = 0x9000, scoped, tag = 'internal scratch']
  %s0 = inlined_call_operand.hbm [shape: f32[1,2048], index: 0, kind: input, shape index: {}]
  %s1 = inlined_call_operand.hbm [shape: f32[1,2048], index: 1, kind: output, shape index: {}]
  %s2 = sld [smem:[#allocation0]]
  $region18: #{tpu_custom_call.1} parent=0
    _
  %s4 = ssub.s32 1, %s2
  %s5 = scalar_select 0, %s4, %s2
  $region1: #{tpu_custom_call.1} parent=0
    #allocation2 [shape = 'u8[8192]{0}', space=vmem, size = 0x2000, scoped, tag = 'input window, operand 0, single buffered']
    #allocation3 [shape = 's32[1]{0}', space=sflag, size = 0x4, scoped, tag = 'scoped memory for tpu_custom_call.1']
    #allocation4 [shape = 's32[1]{0}', space=sflag, size = 0x4, scoped, tag = 'scoped memory for tpu_custom_call.1']
    #allocation5 [shape = 'u8[8192]{0}', space=vmem, size = 0x2000, scoped, tag = 'output window, operand 0, single buffered']
    %6 = vsyncpa [#allocation3], 0
    %7 = vsyncpa [#allocation4], 0
    // Predicated region
    $region2: #{tpu_custom_call.1} parent=1 // pred_check
      _
    $region3: #{tpu_custom_call.1} parent=1 // pred_check_branch
      %9 = sbr.rel (0) target = $region5
    $region4: #{tpu_custom_call.1} parent=1 // pred_region
      %11 = vsyncadd [#allocation3], 0
      %s13 = sshll.u32 %s0, 4
      %s14 = int_to_ptr.hbm [resolvable:$true] %s13
      %s15 = sshll.u32 [#allocation2], 4
      %s16 = int_to_ptr.vmem [resolvable:$true] %s15
      %18 = dma.hbm_to_vmem [thread:$0]  %s14, 256, %s16, [#allocation3]
    $region5: #{tpu_custom_call.1} parent=1 // pred_fallthru
      _
    // Predicated region
    $region6: #{tpu_custom_call.1} parent=1 // pred_check
      _
    $region7: #{tpu_custom_call.1} parent=1 // pred_check_branch
      %20 = sbr.rel (0) target = $region9
    $region8: #{tpu_custom_call.1} parent=1 // pred_region
      %22 = dma.done [#allocation3], 256
    $region9: #{tpu_custom_call.1} parent=1 // pred_fallthru
      _
    %v23 = vld [vmem:[#allocation2] sm:$0xff]
    %v24 = vld [vmem:[#allocation2 + $0x8] sm:$0xff]
    %25 = vst [vmem:[#allocation5] sm:$0xff] %v23
    %26 = vst [vmem:[#allocation5 + $0x8] sm:$0xff] %v24
    // Predicated region
    $region10: #{tpu_custom_call.1} parent=1 // pred_check
      _
    $region11: #{tpu_custom_call.1} parent=1 // pred_check_branch
      %28 = sbr.rel (0) target = $region13
    $region12: #{tpu_custom_call.1} parent=1 // pred_region
      %30 = vsyncadd [#allocation4], 0
      %s32 = sshll.u32 [#allocation5], 4
      %s33 = int_to_ptr.vmem [resolvable:$true] %s32
      %s34 = sshll.u32 %s1, 4
      %s35 = int_to_ptr.hbm [resolvable:$true] %s34
      %37 = dma.vmem_to_hbm [thread:$0]  %s33, 256, %s35, [#allocation4]
    $region13: #{tpu_custom_call.1} parent=1 // pred_fallthru
      _
    // Predicated region
    $region14: #{tpu_custom_call.1} parent=1 // pred_check
      _
    $region15: #{tpu_custom_call.1} parent=1 // pred_check_branch
      %39 = sbr.rel (0) target = $region17
    $region16: #{tpu_custom_call.1} parent=1 // pred_region
      %41 = dma.done [#allocation4], 256
    $region17: #{tpu_custom_call.1} parent=1 // pred_fallthru
      _
    %42 = vsyncpa [#allocation3], 1
    %43 = vsyncpa [#allocation4], 1

</llo_original>
